<compile_context>
chip_gen: v7x
topology: tpu7x:2x2x1
jax: 0.10.0
libtpu: 0.0.40
codegen_flags: <defaults>
</compile_context>

<pallas_src>
import functools

import jax
import jax.numpy as jnp
from jax.experimental import pallas as pl
from jax.experimental.pallas import tpu as pltpu


# ----------------------------------------------------------------------------
# Kernel
# ----------------------------------------------------------------------------
def _mlp_kernel(x_ref, *refs):
    """Fused MLP chain: (Linear -> ReLU) repeated, entirely on-chip.

    refs = (w0, b0, w1, b1, ..., w_{L-1}, b_{L-1}, out_ref)
    """
    out_ref = refs[-1]
    wb_refs = refs[:-1]
    n_layers = len(wb_refs) // 2

    h = x_ref[...]
    for i in range(n_layers):
        w_ref = wb_refs[2 * i]          # (din_i, dout_i)
        b_ref = wb_refs[2 * i + 1]      # (1, dout_i)
        # Feed the MXU in the weights' native dtype (no-op for f32, keeps bf16
        # operands bf16 on v6e/v7x); accumulate in f32 on the MXU.
        lhs = h.astype(w_ref.dtype)
        acc = jnp.dot(lhs, w_ref[...], preferred_element_type=jnp.float32)
        # Bias-add + ReLU in f32 on the VPU (v5e has no bf16 VPU).
        h = jnp.maximum(acc + b_ref[...].astype(jnp.float32), 0.0)
    out_ref[...] = h.astype(out_ref.dtype)


# ----------------------------------------------------------------------------
# Tiling / VMEM heuristics
# ----------------------------------------------------------------------------
def _round_up(x, m):
    return ((x + m - 1) // m) * m


def _round_down(x, m):
    return (x // m) * m


def _lane_pad(d):
    # A (rows, d) block occupies full 128-lane vreg tiles in VMEM.
    return _round_up(d, 128)


def _vmem_capacity_bytes():
    """Physical per-core VMEM; conservative fallback if the query fails."""
    try:
        return int(pltpu.get_tpu_info().vmem_capacity_bytes)
    except Exception:
        return 64 << 20  # v7x per-TC size: safe lower bound for all gens


def _pick_tile_m(M, dims, itemsize, vmem_budget_bytes, *,
                 row_cap=32768, min_grid=8):
    """Largest sublane-aligned row tile fitting the VMEM budget.

    Accounts for (8,128) lane padding of the narrow (<=128-wide) in/out blocks
    and for the live f32 activation working set inside the kernel.
    """
    align = 8 if itemsize >= 4 else 16   # f32: 8 rows per vreg; bf16: 16

    # Resident weights + biases (double-buffered by the default BlockSpec),
    # padded to (sublane, 128) tiles.  Tiny for this module, but kept honest.
    static = 0
    for i in range(len(dims) - 1):
        w_rows = _round_up(dims[i], align)
        static += 2 * (w_rows * _lane_pad(dims[i + 1])
                       + 8 * _lane_pad(dims[i + 1])) * itemsize

    # Per-row bytes: double-buffered x/out blocks (lane-padded) plus ~3 live
    # lane-padded f32 activation values inside the layer chain.
    per_row = ((2 * _lane_pad(dims[0]) + 2 * _lane_pad(dims[-1])) * itemsize
               + 3 * _lane_pad(max(dims)) * 4)

    budget_rows = max(align, (vmem_budget_bytes - static) // per_row)
    cap = min(row_cap, budget_rows, _round_up(M, align))

    # Keep >= min_grid grid steps (when M allows) so "parallel" sharding
    # across v7x's two TensorCores has work, and pipelining stays active.
    if M >= min_grid * align:
        cap = min(cap, max(align, _round_down(M // min_grid, align)))

    return max(align, _round_down(cap, align))


# ----------------------------------------------------------------------------
# Wrapper
# ----------------------------------------------------------------------------
def mlp_forward(x, weights, biases, output_dim, *, tile_m=None,
                vmem_limit_bytes=None):
    """x: (B, N, input_dim) -> (B, N, output_dim, output_dim)."""
    B, N, d_in = x.shape
    M = B * N
    d_out = weights[-1].shape[1]
    assert d_out == output_dim * output_dim

    itemsize = jnp.dtype(x.dtype).itemsize
    dims = [d_in] + [w.shape[1] for w in weights]

    phys_vmem = _vmem_capacity_bytes()
    if vmem_limit_bytes is None:
        vmem_limit_bytes = int(phys_vmem * 0.75)       # ~48 MiB v7x / 96 MiB v6e
    vmem_budget = int(phys_vmem * 0.60)                # working-set target

    if tile_m is None:
        tile_m = _pick_tile_m(M, dims, itemsize, vmem_budget)

    # Pad rows up to a multiple of tile_m (no whole-array fallback / divisor
    # search); padded rows are sliced off the output.
    M_pad = _round_up(M, tile_m)
    x_flat = x.reshape(M, d_in)
    if M_pad != M:
        x_flat = jnp.pad(x_flat, ((0, M_pad - M), (0, 0)))

    in_specs = [pl.BlockSpec((tile_m, d_in), lambda i: (i, 0))]
    args = [x_flat]
    for w, b in zip(weights, biases):
        # Whole-weight blocks with a constant index_map: loaded once, resident.
        in_specs.append(pl.BlockSpec(w.shape, lambda i: (0, 0)))
        in_specs.append(pl.BlockSpec(b.shape, lambda i: (0, 0)))
        args.append(w)
        args.append(b)

    flops = 2 * M_pad * sum(dims[i] * dims[i + 1] for i in range(len(dims) - 1))
    param_bytes = sum(int(w.size) + int(b.size) for w, b in zip(weights, biases)) * itemsize
    bytes_accessed = M_pad * (d_in + d_out) * itemsize + param_bytes

    out = pl.pallas_call(
        _mlp_kernel,
        grid=(M_pad // tile_m,),
        in_specs=in_specs,
        out_specs=pl.BlockSpec((tile_m, d_out), lambda i: (i, 0)),
        out_shape=jax.ShapeDtypeStruct((M_pad, d_out), x.dtype),
        compiler_params=pltpu.CompilerParams(
            dimension_semantics=("parallel",),   # row grid shards across TCs
            vmem_limit_bytes=vmem_limit_bytes),
        cost_estimate=pl.CostEstimate(
            flops=flops, transcendentals=0, bytes_accessed=bytes_accessed),
    )(*args)

    if M_pad != M:
        out = out[:M]
    return out.reshape(B, N, output_dim, output_dim)


# ----------------------------------------------------------------------------
# Params / reference
# ----------------------------------------------------------------------------
def init_mlp_params(key, input_dim, hidden_dim, output_dim, num_layers,
                    dtype=jnp.float32):
    """Deterministic init matching nn.Linear's default (uniform +/-1/sqrt(fan_in)).

    Weights are stored as (in_features, out_features).
    """
    dims = [input_dim] + [hidden_dim] * num_layers + [output_dim * output_dim]
    weights, biases = [], []
    for i in range(len(dims) - 1):
        key, kw, kb = jax.random.split(key, 3)
        fan_in = dims[i]
        bound = 1.0 / (fan_in ** 0.5)
        w = jax.random.uniform(kw, (dims[i], dims[i + 1]),
                               minval=-bound, maxval=bound,
                               dtype=jnp.float32).astype(dtype)
        b = jax.random.uniform(kb, (1, dims[i + 1]),
                               minval=-bound, maxval=bound,
                               dtype=jnp.float32).astype(dtype)
        weights.append(w)
        biases.append(b)
    return weights, biases


def reference_forward(x, weights, biases, output_dim):
    """Plain-JAX reference of the PyTorch module forward (f32 math)."""
    B, N, _ = x.shape
    h = x.reshape(B * N, -1).astype(jnp.float32)
    for w, b in zip(weights, biases):
        h = jnp.maximum(h @ w.astype(jnp.float32) + b.astype(jnp.float32), 0.0)
    return h.astype(x.dtype).reshape(B, N, output_dim, output_dim)


# ----------------------------------------------------------------------------
# Demo / correctness
# ----------------------------------------------------------------------------
if __name__ == "__main__":
    # Module hyper-parameters (small, consistent with the forward).
    input_dim = 16
    hidden_dim = 32
    output_dim = 4          # final feature dim = output_dim**2 = 16
    num_layers = 2

    # Input: (B, N, input_dim)
    B, N = 2, 8

    key = jax.random.PRNGKey(0)
    key, kx = jax.random.split(key)
    x = jax.random.normal(kx, (B, N, input_dim), dtype=jnp.float32)

    weights, biases = init_mlp_params(key, input_dim, hidden_dim,
                                      output_dim, num_layers,
                                      dtype=jnp.float32)

    run = jax.jit(functools.partial(mlp_forward, output_dim=output_dim))
    out = jax.block_until_ready(run(x, weights, biases))

    ref = reference_forward(x, weights, biases, output_dim)
    assert out.shape == (B, N, output_dim, output_dim), out.shape
    assert jnp.allclose(out, ref, atol=1e-5, rtol=1e-5), "f32 mismatch vs reference"

    # bf16 I/O path (the memory-bound win on v6e/v7x): same kernel, bf16 in/out,
    # f32 MXU accumulation + f32 epilogue.  Loose tolerance vs the f32 reference
    # since activations are rounded to bf16 between layers.
    x_bf = x.astype(jnp.bfloat16)
    weights_bf = [w.astype(jnp.bfloat16) for w in weights]
    biases_bf = [b.astype(jnp.bfloat16) for b in biases]
    out_bf = jax.block_until_ready(run(x_bf, weights_bf, biases_bf))
    ref_bf = reference_forward(x_bf, weights_bf, biases_bf, output_dim)
    assert out_bf.shape == (B, N, output_dim, output_dim), out_bf.shape
    assert jnp.allclose(out_bf.astype(jnp.float32), ref_bf.astype(jnp.float32),
                        atol=2e-2, rtol=2e-2), "bf16 mismatch vs reference"

    print("KERNEL_OK")
</pallas_src>

<mosaic_0001>
module attributes {stable_mosaic.version = 11 : i64} {
  func.func @_mlp_kernel(%arg0: i32, %arg1: memref<16x16xf32, #tpu.memory_space<vmem>>, %arg2: memref<16x32xf32, #tpu.memory_space<vmem>>, %arg3: memref<1x32xf32, #tpu.memory_space<vmem>>, %arg4: memref<32x32xf32, #tpu.memory_space<vmem>>, %arg5: memref<1x32xf32, #tpu.memory_space<vmem>>, %arg6: memref<32x16xf32, #tpu.memory_space<vmem>>, %arg7: memref<1x16xf32, #tpu.memory_space<vmem>>, %arg8: memref<16x16xf32, #tpu.memory_space<vmem>>) attributes {dimension_semantics = [#tpu.dimension_semantics<parallel>], iteration_bounds = array<i64: 1>, scalar_prefetch = 0 : i64, scratch_operands = 0 : i64, tpu.core_type = #tpu.core_type<tc>, window_params = [{transform_indices = @transform_0, window_bounds = array<i64: 16, 16>}, {pipeline_mode = #tpu.pipeline_mode<synchronous>, transform_indices = @transform_1, window_bounds = array<i64: 16, 32>}, {pipeline_mode = #tpu.pipeline_mode<synchronous>, transform_indices = @transform_2, window_bounds = array<i64: 1, 32>}, {pipeline_mode = #tpu.pipeline_mode<synchronous>, transform_indices = @transform_3, window_bounds = array<i64: 32, 32>}, {pipeline_mode = #tpu.pipeline_mode<synchronous>, transform_indices = @transform_4, window_bounds = array<i64: 1, 32>}, {pipeline_mode = #tpu.pipeline_mode<synchronous>, transform_indices = @transform_5, window_bounds = array<i64: 32, 16>}, {pipeline_mode = #tpu.pipeline_mode<synchronous>, transform_indices = @transform_6, window_bounds = array<i64: 1, 16>}, {transform_indices = @transform_7, window_bounds = array<i64: 16, 16>}]} {
    %c0 = arith.constant 0 : index
    %c0_0 = arith.constant 0 : index
    %0 = vector.load %arg1[%c0, %c0_0] : memref<16x16xf32, #tpu.memory_space<vmem>>, vector<16x16xf32>
    %c0_1 = arith.constant 0 : index
    %c0_2 = arith.constant 0 : index
    %1 = vector.load %arg2[%c0_1, %c0_2] : memref<16x32xf32, #tpu.memory_space<vmem>>, vector<16x32xf32>
    %cst = arith.constant dense<0.000000e+00> : vector<16x32xf32>
    %2 = tpu.matmul %0, %1, %cst {dimension_numbers = #tpu.dot_dimension_numbers<[1], [0], [0], [1], [0, 0, 1, 1], [], []>} : vector<16x16xf32>, vector<16x32xf32>, vector<16x32xf32> -> vector<16x32xf32>
    %c0_3 = arith.constant 0 : index
    %c0_4 = arith.constant 0 : index
    %3 = vector.load %arg3[%c0_3, %c0_4] : memref<1x32xf32, #tpu.memory_space<vmem>>, vector<1x32xf32>
    %4 = vector.broadcast %3 : vector<1x32xf32> to vector<16x32xf32>
    %5 = arith.addf %2, %4 : vector<16x32xf32>
    %cst_5 = arith.constant 0.000000e+00 : f32
    %6 = vector.broadcast %cst_5 : f32 to vector<16x32xf32>
    %7 = arith.maximumf %5, %6 : vector<16x32xf32>
    %c0_6 = arith.constant 0 : index
    %c0_7 = arith.constant 0 : index
    %8 = vector.load %arg4[%c0_6, %c0_7] : memref<32x32xf32, #tpu.memory_space<vmem>>, vector<32x32xf32>
    %cst_8 = arith.constant dense<0.000000e+00> : vector<16x32xf32>
    %9 = tpu.matmul %7, %8, %cst_8 {dimension_numbers = #tpu.dot_dimension_numbers<[1], [0], [0], [1], [0, 0, 1, 1], [], []>} : vector<16x32xf32>, vector<32x32xf32>, vector<16x32xf32> -> vector<16x32xf32>
    %c0_9 = arith.constant 0 : index
    %c0_10 = arith.constant 0 : index
    %10 = vector.load %arg5[%c0_9, %c0_10] : memref<1x32xf32, #tpu.memory_space<vmem>>, vector<1x32xf32>
    %11 = vector.broadcast %10 : vector<1x32xf32> to vector<16x32xf32>
    %12 = arith.addf %9, %11 : vector<16x32xf32>
    %cst_11 = arith.constant 0.000000e+00 : f32
    %13 = vector.broadcast %cst_11 : f32 to vector<16x32xf32>
    %14 = arith.maximumf %12, %13 : vector<16x32xf32>
    %c0_12 = arith.constant 0 : index
    %c0_13 = arith.constant 0 : index
    %15 = vector.load %arg6[%c0_12, %c0_13] : memref<32x16xf32, #tpu.memory_space<vmem>>, vector<32x16xf32>
    %cst_14 = arith.constant dense<0.000000e+00> : vector<16x16xf32>
    %16 = tpu.matmul %14, %15, %cst_14 {dimension_numbers = #tpu.dot_dimension_numbers<[1], [0], [0], [1], [0, 0, 1, 1], [], []>} : vector<16x32xf32>, vector<32x16xf32>, vector<16x16xf32> -> vector<16x16xf32>
    %c0_15 = arith.constant 0 : index
    %c0_16 = arith.constant 0 : index
    %17 = vector.load %arg7[%c0_15, %c0_16] : memref<1x16xf32, #tpu.memory_space<vmem>>, vector<1x16xf32>
    %18 = vector.broadcast %17 : vector<1x16xf32> to vector<16x16xf32>
    %19 = arith.addf %16, %18 : vector<16x16xf32>
    %cst_17 = arith.constant 0.000000e+00 : f32
    %20 = vector.broadcast %cst_17 : f32 to vector<16x16xf32>
    %21 = arith.maximumf %19, %20 : vector<16x16xf32>
    %c0_18 = arith.constant 0 : index
    %c0_19 = arith.constant 0 : index
    %22 = vector.load %arg8[%c0_18, %c0_19] : memref<16x16xf32, #tpu.memory_space<vmem>>, vector<16x16xf32>
    tpu.vector_store %arg8[%c0_18, %c0_19], %21 {strides = array<i32>} : memref<16x16xf32, #tpu.memory_space<vmem>>, vector<16x16xf32>,
    return
  }
  func.func @transform_0(%arg0: i32) -> (i32, i32) {
    %c0_i32 = arith.constant 0 : i32
    %c0_i32_0 = arith.constant 0 : i32
    return %arg0, %c0_i32 : i32, i32
  }
  func.func @transform_1(%arg0: i32) -> (i32, i32) {
    %c0_i32 = arith.constant 0 : i32
    %c0_i32_0 = arith.constant 0 : i32
    %c0_i32_1 = arith.constant 0 : i32
    return %c0_i32, %c0_i32_0 : i32, i32
  }
  func.func @transform_2(%arg0: i32) -> (i32, i32) {
    %c0_i32 = arith.constant 0 : i32
    %c0_i32_0 = arith.constant 0 : i32
    %c0_i32_1 = arith.constant 0 : i32
    return %c0_i32, %c0_i32_0 : i32, i32
  }
  func.func @transform_3(%arg0: i32) -> (i32, i32) {
    %c0_i32 = arith.constant 0 : i32
    %c0_i32_0 = arith.constant 0 : i32
    %c0_i32_1 = arith.constant 0 : i32
    return %c0_i32, %c0_i32_0 : i32, i32
  }
  func.func @transform_4(%arg0: i32) -> (i32, i32) {
    %c0_i32 = arith.constant 0 : i32
    %c0_i32_0 = arith.constant 0 : i32
    %c0_i32_1 = arith.constant 0 : i32
    return %c0_i32, %c0_i32_0 : i32, i32
  }
  func.func @transform_5(%arg0: i32) -> (i32, i32) {
    %c0_i32 = arith.constant 0 : i32
    %c0_i32_0 = arith.constant 0 : i32
    %c0_i32_1 = arith.constant 0 : i32
    return %c0_i32, %c0_i32_0 : i32, i32
  }
  func.func @transform_6(%arg0: i32) -> (i32, i32) {
    %c0_i32 = arith.constant 0 : i32
    %c0_i32_0 = arith.constant 0 : i32
    %c0_i32_1 = arith.constant 0 : i32
    return %c0_i32, %c0_i32_0 : i32, i32
  }
  func.func @transform_7(%arg0: i32) -> (i32, i32) {
    %c0_i32 = arith.constant 0 : i32
    %c0_i32_0 = arith.constant 0 : i32
    return %arg0, %c0_i32 : i32, i32
  }
}

</mosaic_0001>

<llo_original>
// kernel: mlp_forward.1
$region0: #{mlp_forward.1}
  #allocation0 [shape = 'u32[]', space=smem, size = 0x4, offset = 0x4, fixed_abs, tag = 'smem constant byte address 0x4 - core index']
  #allocation1 [shape = 'u32[144,128]{1,0:T(1,128)}', space=vmem, size = 0x12000, scoped, tag = 'internal scratch']
  %s0 = inlined_call_operand.vmem [shape: f32[16,16], index: 0, kind: input, shape index: {}]
  %s1 = inlined_call_operand.hbm [shape: f32[16,32], index: 1, kind: input, shape index: {}]
  %s2 = inlined_call_operand.vmem [shape: f32[1,32], index: 2, kind: input, shape index: {}]
  %s3 = inlined_call_operand.vmem [shape: f32[32,32], index: 3, kind: input, shape index: {}]
  %s4 = inlined_call_operand.vmem [shape: f32[1,32], index: 4, kind: input, shape index: {}]
  %s5 = inlined_call_operand.vmem [shape: f32[32,16], index: 5, kind: input, shape index: {}]
  %s6 = inlined_call_operand.vmem [shape: f32[1,16], index: 6, kind: input, shape index: {}]
  %s7 = inlined_call_operand.vmem [shape: f32[16,16], index: 7, kind: output, shape index: {}]
  %s8 = sld [smem:[#allocation0]]
  $region42: #{mlp_forward.1} parent=0
    _
  %s10 = ssub.s32 1, %s8
  %s11 = scalar_select 0, %s10, %s8
  $region1: #{mlp_forward.1} parent=0
    #allocation2 [shape = 'u8[8192]{0}', space=vmem, size = 0x2000, scoped, tag = 'input window, operand 1, single buffered']
    #allocation3 [shape = 's32[1]{0}', space=sflag, size = 0x4, scoped, tag = 'scoped memory for mlp_forward.1']
    %12 = vsyncpa [#allocation3], 0
    // Predicated region
    $region2: #{mlp_forward.1} parent=1 // pred_check
      _
    $region3: #{mlp_forward.1} parent=1 // pred_check_branch
      %14 = sbr.rel (0) target = $region5
    $region4: #{mlp_forward.1} parent=1 // pred_region
      _
    $region5: #{mlp_forward.1} parent=1 // pred_fallthru
      _
    // Predicated region
    $region6: #{mlp_forward.1} parent=1 // pred_check
      _
    $region7: #{mlp_forward.1} parent=1 // pred_check_branch
      %16 = sbr.rel (0) target = $region9
    $region8: #{mlp_forward.1} parent=1 // pred_region
      %s18 = ssub.s32 256, 256
      %19 = vsyncadd [#allocation3], %s18
      %s20 = sshll.u32 [#allocation2], 4
      %s21 = int_to_ptr.vmem [resolvable:$true] %s20
      %26 = dma.hbm_to_vmem [thread:$0]  %s1, 256, %s21, [#allocation3], 128, 128, 8
    $region9: #{mlp_forward.1} parent=1 // pred_fallthru
      _
    // Predicated region
    $region10: #{mlp_forward.1} parent=1 // pred_check
      _
    $region11: #{mlp_forward.1} parent=1 // pred_check_branch
      %28 = sbr.rel (0) target = $region13
    $region12: #{mlp_forward.1} parent=1 // pred_region
      _
    $region13: #{mlp_forward.1} parent=1 // pred_fallthru
      _
    // Predicated region
    $region14: #{mlp_forward.1} parent=1 // pred_check
      _
    $region15: #{mlp_forward.1} parent=1 // pred_check_branch
      %30 = sbr.rel (0) target = $region17
    $region16: #{mlp_forward.1} parent=1 // pred_region
      _
    $region17: #{mlp_forward.1} parent=1 // pred_fallthru
      _
    // Predicated region
    $region18: #{mlp_forward.1} parent=1 // pred_check
      _
    $region19: #{mlp_forward.1} parent=1 // pred_check_branch
      %32 = sbr.rel (0) target = $region21
    $region20: #{mlp_forward.1} parent=1 // pred_region
      _
    $region21: #{mlp_forward.1} parent=1 // pred_fallthru
      _
    // Predicated region
    $region22: #{mlp_forward.1} parent=1 // pred_check
      _
    $region23: #{mlp_forward.1} parent=1 // pred_check_branch
      %34 = sbr.rel (0) target = $region25
    $region24: #{mlp_forward.1} parent=1 // pred_region
      _
    $region25: #{mlp_forward.1} parent=1 // pred_fallthru
      _
    // Predicated region
    $region26: #{mlp_forward.1} parent=1 // pred_check
      _
    $region27: #{mlp_forward.1} parent=1 // pred_check_branch
      %36 = sbr.rel (0) target = $region29
    $region28: #{mlp_forward.1} parent=1 // pred_region
      _
    $region29: #{mlp_forward.1} parent=1 // pred_fallthru
      _
    // Predicated region
    $region30: #{mlp_forward.1} parent=1 // pred_check
      _
    $region31: #{mlp_forward.1} parent=1 // pred_check_branch
      %38 = sbr.rel (0) target = $region33
    $region32: #{mlp_forward.1} parent=1 // pred_region
      %39 = dma.done [#allocation3], 256
    $region33: #{mlp_forward.1} parent=1 // pred_fallthru
      _
    %v40 = vld [vmem:[%s0] sm:$0xff]
    %v41 = vld [vmem:[%s0 + $0x8] sm:$0xff]
    %v42 = vld [vmem:[#allocation2] sm:$0xff]
    %v43 = vld [vmem:[#allocation2 + $0x8] sm:$0xff]
    %v44 = vld [vmem:[%s2] sm:$0x1]
    %v46 = vlaneseq
    %v47 = vshrl.u32 %v46, 7
    %v48 = vsub.s32 0, %v47
    %v49 = vrot.slane %v44, %v48
    %vm51 = vcmask 130048
    %v53 = vsel %vm51, %v40, 0
    %v56 = vsel %vm51, %v41, 0
    %58 = vmatprep.subr.mxu0 0.0
    %59 = vmatpush1.msra.mxu0 %v42
    %60 = vmatprep.subr.mxu0 0.0
    %61 = vmatpush1.msra.mxu0 %v43
    %62 = vmatprep.subr.mxu0 0.0
    %63 = vmatpush1.msra.mxu0 0.0
    %64 = vmatprep.subr.mxu0 0.0
    %65 = vmatpush1.msra.mxu0 0.0
    %66 = vmatprep.subr.mxu0 0.0
    %67 = vmatpush1.msra.mxu0 0.0
    %68 = vmatprep.subr.mxu0 0.0
    %69 = vmatpush1.msra.mxu0 0.0
    %70 = vmatprep.subr.mxu0 0.0
    %71 = vmatpush1.msra.mxu0 0.0
    %72 = vmatprep.subr.mxu0 0.0
    %73 = vmatpush1.msra.mxu0 0.0
    %74 = vmatprep.subr.mxu0 0.0
    %75 = vmatpush1.msra.mxu0 0.0
    %76 = vmatprep.subr.mxu0 0.0
    %77 = vmatpush1.msra.mxu0 0.0
    %78 = vmatprep.subr.mxu0 0.0
    %79 = vmatpush1.msra.mxu0 0.0
    %80 = vmatprep.subr.mxu0 0.0
    %81 = vmatpush1.msra.mxu0 0.0
    %82 = vmatprep.subr.mxu0 0.0
    %83 = vmatpush1.msra.mxu0 0.0
    %84 = vmatprep.subr.mxu0 0.0
    %85 = vmatpush1.msra.mxu0 0.0
    %86 = vmatprep.subr.mxu0 0.0
    %87 = vmatpush1.msra.mxu0 0.0
    %88 = vmatprep.subr.mxu0 0.0
    %89 = vmatpush1.msra.mxu0 0.0
    %90 = vmatprep.subr.mxu0 0.0
    %91 = vmatpush1.msra.mxu0 0.0
    %92 = vmatprep.subr.mxu0 0.0
    %93 = vmatpush1.msra.mxu0 0.0
    %94 = vmatprep.subr.mxu0 0.0
    %95 = vmatpush1.msra.mxu0 0.0
    %96 = vmatprep.subr.mxu0 0.0
    %97 = vmatpush1.msra.mxu0 0.0
    %98 = vmatprep.subr.mxu0 0.0
    %99 = vmatpush1.msra.mxu0 0.0
    %100 = vmatprep.subr.mxu0 0.0
    %101 = vmatpush1.msra.mxu0 0.0
    %102 = vmatprep.subr.mxu0 0.0
    %103 = vmatpush1.msra.mxu0 0.0
    %104 = vmatprep.subr.mxu0 0.0
    %105 = vmatpush1.msra.mxu0 0.0
    %106 = vmatprep.subr.mxu0 0.0
    %107 = vmatpush1.msra.mxu0 0.0
    %108 = vmatprep.subr.mxu0 0.0
    %109 = vmatpush1.msra.mxu0 0.0
    %110 = vmatprep.subr.mxu0 0.0
    %111 = vmatpush1.msra.mxu0 0.0
    %112 = vmatprep.subr.mxu0 0.0
    %113 = vmatpush1.msra.mxu0 0.0
    %114 = vmatprep.subr.mxu0 0.0
    %115 = vmatpush1.msra.mxu0 0.0
    %116 = vmatprep.subr.mxu0 0.0
    %117 = vmatpush1.msra.mxu0 0.0
    %118 = vmatprep.subr.mxu0 0.0
    %119 = vmatpush1.msra.mxu0 0.0
    %120 = vmatprep.subr.mxu0 0.0
    %121 = vmatpush1.msra.mxu0 0.0
    %122 = vmatprep.mubr.f32.mxu0 0.0
    %123 = vmatmul.mubr.f32.gmra.mrb[0].mxu0 %v53
    %v124 = vpop.f32.mrb[0].mxu0
    %v125 = vadd.f32 %v49, %v124
    %v126 = vpop.f32.mrb[0].mxu0
    %127 = vmatprep.mubr.f32.mxu0 0.0
    %128 = vmatmul.mubr.f32.gmra.mrb[0].mxu0 %v56
    %v129 = vpop.f32.mrb[0].mxu0
    %v130 = vadd.f32 %v49, %v129
    %v131 = vpop.f32.mrb[0].mxu0
    %132 = vdwg.mxu0
    %v133 = vmax.f32 %v125, 0.0
    %v134 = vmax.f32 %v130, 0.0
    %v135 = vld [vmem:[%s3] sm:$0xff]
    %v136 = vld [vmem:[%s3 + $0x8] sm:$0xff]
    %v137 = vld [vmem:[%s3 + $0x10] sm:$0xff]
    %v138 = vld [vmem:[%s3 + $0x18] sm:$0xff]
    %v139 = vld [vmem:[%s4] sm:$0x1]
    %v141 = vlaneseq
    %v142 = vshrl.u32 %v141, 7
    %v143 = vsub.s32 0, %v142
    %v144 = vrot.slane %v139, %v143
    %vm146 = vcmask 261120
    %v148 = vsel %vm146, %v133, 0
    %v151 = vsel %vm146, %v134, 0
    %153 = vmatprep.subr.mxu0 0.0
    %154 = vmatpush1.msra.mxu0 %v135
    %155 = vmatprep.subr.mxu0 0.0
    %156 = vmatpush1.msra.mxu0 %v136
    %157 = vmatprep.subr.mxu0 0.0
    %158 = vmatpush1.msra.mxu0 %v137
    %159 = vmatprep.subr.mxu0 0.0
    %160 = vmatpush1.msra.mxu0 %v138
    %161 = vmatprep.subr.mxu0 0.0
    %162 = vmatpush1.msra.mxu0 0.0
    %163 = vmatprep.subr.mxu0 0.0
    %164 = vmatpush1.msra.mxu0 0.0
    %165 = vmatprep.subr.mxu0 0.0
    %166 = vmatpush1.msra.mxu0 0.0
    %167 = vmatprep.subr.mxu0 0.0
    %168 = vmatpush1.msra.mxu0 0.0
    %169 = vmatprep.subr.mxu0 0.0
    %170 = vmatpush1.msra.mxu0 0.0
    %171 = vmatprep.subr.mxu0 0.0
    %172 = vmatpush1.msra.mxu0 0.0
    %173 = vmatprep.subr.mxu0 0.0
    %174 = vmatpush1.msra.mxu0 0.0
    %175 = vmatprep.subr.mxu0 0.0
    %176 = vmatpush1.msra.mxu0 0.0
    %177 = vmatprep.subr.mxu0 0.0
    %178 = vmatpush1.msra.mxu0 0.0
    %179 = vmatprep.subr.mxu0 0.0
    %180 = vmatpush1.msra.mxu0 0.0
    %181 = vmatprep.subr.mxu0 0.0
    %182 = vmatpush1.msra.mxu0 0.0
    %183 = vmatprep.subr.mxu0 0.0
    %184 = vmatpush1.msra.mxu0 0.0
    %185 = vmatprep.subr.mxu0 0.0
    %186 = vmatpush1.msra.mxu0 0.0
    %187 = vmatprep.subr.mxu0 0.0
    %188 = vmatpush1.msra.mxu0 0.0
    %189 = vmatprep.subr.mxu0 0.0
    %190 = vmatpush1.msra.mxu0 0.0
    %191 = vmatprep.subr.mxu0 0.0
    %192 = vmatpush1.msra.mxu0 0.0
    %193 = vmatprep.subr.mxu0 0.0
    %194 = vmatpush1.msra.mxu0 0.0
    %195 = vmatprep.subr.mxu0 0.0
    %196 = vmatpush1.msra.mxu0 0.0
    %197 = vmatprep.subr.mxu0 0.0
    %198 = vmatpush1.msra.mxu0 0.0
    %199 = vmatprep.subr.mxu0 0.0
    %200 = vmatpush1.msra.mxu0 0.0
    %201 = vmatprep.subr.mxu0 0.0
    %202 = vmatpush1.msra.mxu0 0.0
    %203 = vmatprep.subr.mxu0 0.0
    %204 = vmatpush1.msra.mxu0 0.0
    %205 = vmatprep.subr.mxu0 0.0
    %206 = vmatpush1.msra.mxu0 0.0
    %207 = vmatprep.subr.mxu0 0.0
    %208 = vmatpush1.msra.mxu0 0.0
    %209 = vmatprep.subr.mxu0 0.0
    %210 = vmatpush1.msra.mxu0 0.0
    %211 = vmatprep.subr.mxu0 0.0
    %212 = vmatpush1.msra.mxu0 0.0
    %213 = vmatprep.subr.mxu0 0.0
    %214 = vmatpush1.msra.mxu0 0.0
    %215 = vmatprep.subr.mxu0 0.0
    %216 = vmatpush1.msra.mxu0 0.0
    %217 = vmatprep.mubr.f32.mxu0 0.0
    %218 = vmatmul.mubr.f32.gmra.mrb[0].mxu0 %v148
    %v219 = vpop.f32.mrb[0].mxu0
    %v220 = vadd.f32 %v144, %v219
    %v221 = vpop.f32.mrb[0].mxu0
    %222 = vmatprep.mubr.f32.mxu0 0.0
    %223 = vmatmul.mubr.f32.gmra.mrb[0].mxu0 %v151
    %v224 = vpop.f32.mrb[0].mxu0
    %v225 = vadd.f32 %v144, %v224
    %v226 = vpop.f32.mrb[0].mxu0
    %227 = vdwg.mxu0
    %v228 = vmax.f32 %v220, 0.0
    %v229 = vmax.f32 %v225, 0.0
    %v230 = vld [vmem:[%s5] sm:$0xff]
    %v231 = vld [vmem:[%s5 + $0x8] sm:$0xff]
    %v232 = vld [vmem:[%s5 + $0x10] sm:$0xff]
    %v233 = vld [vmem:[%s5 + $0x18] sm:$0xff]
    %v234 = vld [vmem:[%s6] sm:$0x1]
    %v236 = vlaneseq
    %v237 = vshrl.u32 %v236, 7
    %v238 = vsub.s32 0, %v237
    %v239 = vrot.slane %v234, %v238
    %v242 = vsel %vm146, %v228, 0
    %v245 = vsel %vm146, %v229, 0
    %247 = vmatprep.subr.mxu0 0.0
    %248 = vmatpush1.msra.mxu0 %v230
    %249 = vmatprep.subr.mxu0 0.0
    %250 = vmatpush1.msra.mxu0 %v231
    %251 = vmatprep.subr.mxu0 0.0
    %252 = vmatpush1.msra.mxu0 %v232
    %253 = vmatprep.subr.mxu0 0.0
    %254 = vmatpush1.msra.mxu0 %v233
    %255 = vmatprep.subr.mxu0 0.0
    %256 = vmatpush1.msra.mxu0 0.0
    %257 = vmatprep.subr.mxu0 0.0
    %258 = vmatpush1.msra.mxu0 0.0
    %259 = vmatprep.subr.mxu0 0.0
    %260 = vmatpush1.msra.mxu0 0.0
    %261 = vmatprep.subr.mxu0 0.0
    %262 = vmatpush1.msra.mxu0 0.0
    %263 = vmatprep.subr.mxu0 0.0
    %264 = vmatpush1.msra.mxu0 0.0
    %265 = vmatprep.subr.mxu0 0.0
    %266 = vmatpush1.msra.mxu0 0.0
    %267 = vmatprep.subr.mxu0 0.0
    %268 = vmatpush1.msra.mxu0 0.0
    %269 = vmatprep.subr.mxu0 0.0
    %270 = vmatpush1.msra.mxu0 0.0
    %271 = vmatprep.subr.mxu0 0.0
    %272 = vmatpush1.msra.mxu0 0.0
    %273 = vmatprep.subr.mxu0 0.0
    %274 = vmatpush1.msra.mxu0 0.0
    %275 = vmatprep.subr.mxu0 0.0
    %276 = vmatpush1.msra.mxu0 0.0
    %277 = vmatprep.subr.mxu0 0.0
    %278 = vmatpush1.msra.mxu0 0.0
    %279 = vmatprep.subr.mxu0 0.0
    %280 = vmatpush1.msra.mxu0 0.0
    %281 = vmatprep.subr.mxu0 0.0
    %282 = vmatpush1.msra.mxu0 0.0
    %283 = vmatprep.subr.mxu0 0.0
    %284 = vmatpush1.msra.mxu0 0.0
    %285 = vmatprep.subr.mxu0 0.0
    %286 = vmatpush1.msra.mxu0 0.0
    %287 = vmatprep.subr.mxu0 0.0
    %288 = vmatpush1.msra.mxu0 0.0
    %289 = vmatprep.subr.mxu0 0.0
    %290 = vmatpush1.msra.mxu0 0.0
    %291 = vmatprep.subr.mxu0 0.0
    %292 = vmatpush1.msra.mxu0 0.0
    %293 = vmatprep.subr.mxu0 0.0
    %294 = vmatpush1.msra.mxu0 0.0
    %295 = vmatprep.subr.mxu0 0.0
    %296 = vmatpush1.msra.mxu0 0.0
    %297 = vmatprep.subr.mxu0 0.0
    %298 = vmatpush1.msra.mxu0 0.0
    %299 = vmatprep.subr.mxu0 0.0
    %300 = vmatpush1.msra.mxu0 0.0
    %301 = vmatprep.subr.mxu0 0.0
    %302 = vmatpush1.msra.mxu0 0.0
    %303 = vmatprep.subr.mxu0 0.0
    %304 = vmatpush1.msra.mxu0 0.0
    %305 = vmatprep.subr.mxu0 0.0
    %306 = vmatpush1.msra.mxu0 0.0
    %307 = vmatprep.subr.mxu0 0.0
    %308 = vmatpush1.msra.mxu0 0.0
    %309 = vmatprep.subr.mxu0 0.0
    %310 = vmatpush1.msra.mxu0 0.0
    %311 = vmatprep.mubr.f32.mxu0 0.0
    %312 = vmatmul.mubr.f32.gmra.mrb[0].mxu0 %v242
    %v313 = vpop.f32.mrb[0].mxu0
    %v314 = vadd.f32 %v239, %v313
    %v315 = vpop.f32.mrb[0].mxu0
    %316 = vmatprep.mubr.f32.mxu0 0.0
    %317 = vmatmul.mubr.f32.gmra.mrb[0].mxu0 %v245
    %v318 = vpop.f32.mrb[0].mxu0
    %v319 = vadd.f32 %v239, %v318
    %v320 = vpop.f32.mrb[0].mxu0
    %321 = vdwg.mxu0
    %v322 = vmax.f32 %v314, 0.0
    %v323 = vmax.f32 %v319, 0.0
    %324 = vst.msk [vmem:[%s7] sm:$0xff] %vm51, %v322
    %325 = vst.msk [vmem:[%s7 + $0x8] sm:$0xff] %vm51, %v323
    // Predicated region
    $region34: #{mlp_forward.1} parent=1 // pred_check
      _
    $region35: #{mlp_forward.1} parent=1 // pred_check_branch
      %327 = sbr.rel (0) target = $region37
    $region36: #{mlp_forward.1} parent=1 // pred_region
      _
    $region37: #{mlp_forward.1} parent=1 // pred_fallthru
      _
    // Predicated region
    $region38: #{mlp_forward.1} parent=1 // pred_check
      _
    $region39: #{mlp_forward.1} parent=1 // pred_check_branch
      %329 = sbr.rel (0) target = $region41
    $region40: #{mlp_forward.1} parent=1 // pred_region
      _
    $region41: #{mlp_forward.1} parent=1 // pred_fallthru
      _
    %330 = vsyncpa [#allocation3], 1

</llo_original>
